<compile_context>
chip_gen: v5e
topology: v5e:2x2
jax: 0.10.0
libtpu: 0.0.40
codegen_flags: <defaults>
</compile_context>

<pallas_src>
import functools

import jax
import jax.numpy as jnp
from jax.experimental import pallas as pl
from jax.experimental.pallas import tpu as pltpu

D_IN = 512
D_HID = 512
D_OUT = 256


def _mlp_kernel(x_ref, w1_ref, b1_ref, w2_ref, b2_ref, o_ref):
    # fc1: x cast to bf16 only at the MXU input (f32 in memory); f32 acc.
    h = jnp.dot(x_ref[...].astype(jnp.bfloat16), w1_ref[...],
                preferred_element_type=jnp.float32)
    h = jnp.maximum(h + b1_ref[...], 0.0)              # (TM,512)+(1,512), f32 VPU
    # fc2: bf16 MXU input, f32 accumulation, f32 bias add.
    y = jnp.dot(h.astype(jnp.bfloat16), w2_ref[...],
                preferred_element_type=jnp.float32)
    o_ref[...] = (y + b2_ref[...]).astype(o_ref.dtype)  # (TM,256)+(1,256)


def _round_up(n, m):
    return ((n + m - 1) // m) * m


def prepare_params(w1, b1, w2, b2):
    """One-time init-time conversion.

    Takes PyTorch-layout weights (out, in) and 1-D biases; returns
    (w1_t bf16 (512,512), b1 f32 (1,512), w2_t bf16 (512,256), b2 f32 (1,256)).
    """
    return (jnp.asarray(w1).T.astype(jnp.bfloat16),
            jnp.asarray(b1, jnp.float32).reshape(1, D_HID),
            jnp.asarray(w2).T.astype(jnp.bfloat16),
            jnp.asarray(b2, jnp.float32).reshape(1, D_OUT))


@functools.partial(jax.jit, static_argnames=("tm", "out_dtype"))
def projection_head(x, w1_t, b1, w2_t, b2, *, tm=512, out_dtype=jnp.float32):
    """x: (B, 512) f32 -> (B, 256) out_dtype.

    w1_t: (512, 512) bf16, w2_t: (512, 256) bf16 (use prepare_params),
    b1: (1, 512) f32, b2: (1, 256) f32.
    """
    B = x.shape[0]

    # Weights should already be bf16 (prepare_params); these are compile-time
    # no-ops in that case.
    if w1_t.dtype != jnp.bfloat16:
        w1_t = w1_t.astype(jnp.bfloat16)
    if w2_t.dtype != jnp.bfloat16:
        w2_t = w2_t.astype(jnp.bfloat16)
    b1_f = b1.astype(jnp.float32)
    b2_f = b2.astype(jnp.float32)

    # Batch tile: large (default 512) to amortize per-step overhead; when B is
    # big enough to split, ensure >=2 grid steps so both v7x TCs get work.
    tile = min(tm, _round_up(max(B, 1), 8))
    if B >= 16:
        tile = min(tile, max(8, _round_up(pl.cdiv(B, 2), 8)))
    grid = (pl.cdiv(B, tile),)

    flops = 2 * B * D_IN * D_HID + 2 * B * D_HID * D_OUT
    bytes_accessed = (
        x.size * x.dtype.itemsize          # f32 activations in
        + w1_t.size * 2 + w2_t.size * 2    # bf16 weights
        + b1_f.size * 4 + b2_f.size * 4    # f32 biases
        + B * D_OUT * jnp.dtype(out_dtype).itemsize)  # output

    out = pl.pallas_call(
        _mlp_kernel,
        out_shape=jax.ShapeDtypeStruct((B, D_OUT), out_dtype),
        grid_spec=pltpu.PrefetchScalarGridSpec(
            num_scalar_prefetch=0,
            grid=grid,
            in_specs=[
                pl.BlockSpec((tile, D_IN), lambda i: (i, 0)),    # x tile moves
                pl.BlockSpec((D_IN, D_HID), lambda i: (0, 0)),   # w1 resident
                pl.BlockSpec((1, D_HID), lambda i: (0, 0)),      # b1 resident
                pl.BlockSpec((D_HID, D_OUT), lambda i: (0, 0)),  # w2 resident
                pl.BlockSpec((1, D_OUT), lambda i: (0, 0)),      # b2 resident
            ],
            out_specs=pl.BlockSpec((tile, D_OUT), lambda i: (i, 0)),
        ),
        compiler_params=pltpu.CompilerParams(
            dimension_semantics=("parallel",)),
        cost_estimate=pl.CostEstimate(
            flops=flops, transcendentals=0, bytes_accessed=bytes_accessed),
    )(x, w1_t, b1_f, w2_t, b2_f)

    return out


if __name__ == "__main__":
    key = jax.random.PRNGKey(0)
    kx, kw1, kb1, kw2, kb2, kx2 = jax.random.split(key, 6)

    # PyTorch stores W as (out, in).
    w1 = jax.random.normal(kw1, (D_HID, D_IN), jnp.float32) * 0.02
    b1 = jax.random.normal(kb1, (D_HID,), jnp.float32) * 0.02
    w2 = jax.random.normal(kw2, (D_OUT, D_HID), jnp.float32) * 0.02
    b2 = jax.random.normal(kb2, (D_OUT,), jnp.float32) * 0.02

    # One-time init-time prep (transpose + bf16 weight cast, cached).
    w1_t, b1_r, w2_t, b2_r = prepare_params(w1, b1, w2, b2)

    def ref_fn(xx):
        # Mirrors PyTorch: relu(x @ W1.T + b1) @ W2.T + b2 (f32).
        return jnp.maximum(xx @ w1.T + b1, 0.0) @ w2.T + b2

    # Case 1: small batch, single grid step.
    B = 8
    x = jax.random.normal(kx, (B, D_IN), jnp.float32)
    out = jax.block_until_ready(projection_head(x, w1_t, b1_r, w2_t, b2_r))
    assert out.shape == (B, D_OUT)
    assert jnp.allclose(out, ref_fn(x), atol=2e-2, rtol=2e-2), (
        float(jnp.max(jnp.abs(out - ref_fn(x)))))

    # Case 2: ragged batch exercising the >=2-step grid + masked last block.
    B2 = 20
    x2 = jax.random.normal(kx2, (B2, D_IN), jnp.float32)
    out2 = jax.block_until_ready(projection_head(x2, w1_t, b1_r, w2_t, b2_r))
    assert out2.shape == (B2, D_OUT)
    assert jnp.allclose(out2, ref_fn(x2), atol=2e-2, rtol=2e-2), (
        float(jnp.max(jnp.abs(out2 - ref_fn(x2)))))

    print("KERNEL_OK")
</pallas_src>

<mosaic_0001>
module attributes {stable_mosaic.version = 11 : i64} {
  func.func @_mlp_kernel(%arg0: i32, %arg1: memref<8x512xf32, #tpu.memory_space<vmem>>, %arg2: memref<512x512xbf16, #tpu.memory_space<vmem>>, %arg3: memref<1x512xf32, #tpu.memory_space<vmem>>, %arg4: memref<512x256xbf16, #tpu.memory_space<vmem>>, %arg5: memref<1x256xf32, #tpu.memory_space<vmem>>, %arg6: memref<8x256xf32, #tpu.memory_space<vmem>>) attributes {dimension_semantics = [#tpu.dimension_semantics<parallel>], iteration_bounds = array<i64: 1>, scalar_prefetch = 0 : i64, scratch_operands = 0 : i64, tpu.core_type = #tpu.core_type<tc>, window_params = [{transform_indices = @transform_0, window_bounds = array<i64: 8, 512>}, {pipeline_mode = #tpu.pipeline_mode<synchronous>, transform_indices = @transform_1, window_bounds = array<i64: 512, 512>}, {pipeline_mode = #tpu.pipeline_mode<synchronous>, transform_indices = @transform_2, window_bounds = array<i64: 1, 512>}, {pipeline_mode = #tpu.pipeline_mode<synchronous>, transform_indices = @transform_3, window_bounds = array<i64: 512, 256>}, {pipeline_mode = #tpu.pipeline_mode<synchronous>, transform_indices = @transform_4, window_bounds = array<i64: 1, 256>}, {transform_indices = @transform_5, window_bounds = array<i64: 8, 256>}]} {
    %c0 = arith.constant 0 : index
    %c0_0 = arith.constant 0 : index
    %0 = vector.load %arg1[%c0, %c0_0] : memref<8x512xf32, #tpu.memory_space<vmem>>, vector<8x512xf32>
    %1 = arith.truncf %0 : vector<8x512xf32> to vector<8x512xbf16>
    %c0_1 = arith.constant 0 : index
    %c0_2 = arith.constant 0 : index
    %2 = vector.load %arg2[%c0_1, %c0_2] : memref<512x512xbf16, #tpu.memory_space<vmem>>, vector<512x512xbf16>
    %cst = arith.constant dense<0.000000e+00> : vector<8x512xf32>
    %3 = tpu.matmul %1, %2, %cst {dimension_numbers = #tpu.dot_dimension_numbers<[1], [0], [0], [1], [0, 0, 1, 1], [], []>} : vector<8x512xbf16>, vector<512x512xbf16>, vector<8x512xf32> -> vector<8x512xf32>
    %c0_3 = arith.constant 0 : index
    %c0_4 = arith.constant 0 : index
    %4 = vector.load %arg3[%c0_3, %c0_4] : memref<1x512xf32, #tpu.memory_space<vmem>>, vector<1x512xf32>
    %5 = vector.broadcast %4 : vector<1x512xf32> to vector<8x512xf32>
    %6 = arith.addf %3, %5 : vector<8x512xf32>
    %cst_5 = arith.constant 0.000000e+00 : f32
    %7 = vector.broadcast %cst_5 : f32 to vector<8x512xf32>
    %8 = arith.maximumf %6, %7 : vector<8x512xf32>
    %9 = arith.truncf %8 : vector<8x512xf32> to vector<8x512xbf16>
    %c0_6 = arith.constant 0 : index
    %c0_7 = arith.constant 0 : index
    %10 = vector.load %arg4[%c0_6, %c0_7] : memref<512x256xbf16, #tpu.memory_space<vmem>>, vector<512x256xbf16>
    %cst_8 = arith.constant dense<0.000000e+00> : vector<8x256xf32>
    %11 = tpu.matmul %9, %10, %cst_8 {dimension_numbers = #tpu.dot_dimension_numbers<[1], [0], [0], [1], [0, 0, 1, 1], [], []>} : vector<8x512xbf16>, vector<512x256xbf16>, vector<8x256xf32> -> vector<8x256xf32>
    %c0_9 = arith.constant 0 : index
    %c0_10 = arith.constant 0 : index
    %12 = vector.load %arg5[%c0_9, %c0_10] : memref<1x256xf32, #tpu.memory_space<vmem>>, vector<1x256xf32>
    %13 = vector.broadcast %12 : vector<1x256xf32> to vector<8x256xf32>
    %14 = arith.addf %11, %13 : vector<8x256xf32>
    %c0_11 = arith.constant 0 : index
    %c0_12 = arith.constant 0 : index
    %15 = vector.load %arg6[%c0_11, %c0_12] : memref<8x256xf32, #tpu.memory_space<vmem>>, vector<8x256xf32>
    tpu.vector_store %arg6[%c0_11, %c0_12], %14 {strides = array<i32>} : memref<8x256xf32, #tpu.memory_space<vmem>>, vector<8x256xf32>,
    return
  }
  func.func @transform_0(%arg0: i32) -> (i32, i32) {
    %c0_i32 = arith.constant 0 : i32
    %c0_i32_0 = arith.constant 0 : i32
    return %arg0, %c0_i32 : i32, i32
  }
  func.func @transform_1(%arg0: i32) -> (i32, i32) {
    %c0_i32 = arith.constant 0 : i32
    %c0_i32_0 = arith.constant 0 : i32
    %c0_i32_1 = arith.constant 0 : i32
    return %c0_i32, %c0_i32_0 : i32, i32
  }
  func.func @transform_2(%arg0: i32) -> (i32, i32) {
    %c0_i32 = arith.constant 0 : i32
    %c0_i32_0 = arith.constant 0 : i32
    %c0_i32_1 = arith.constant 0 : i32
    return %c0_i32, %c0_i32_0 : i32, i32
  }
  func.func @transform_3(%arg0: i32) -> (i32, i32) {
    %c0_i32 = arith.constant 0 : i32
    %c0_i32_0 = arith.constant 0 : i32
    %c0_i32_1 = arith.constant 0 : i32
    return %c0_i32, %c0_i32_0 : i32, i32
  }
  func.func @transform_4(%arg0: i32) -> (i32, i32) {
    %c0_i32 = arith.constant 0 : i32
    %c0_i32_0 = arith.constant 0 : i32
    %c0_i32_1 = arith.constant 0 : i32
    return %c0_i32, %c0_i32_0 : i32, i32
  }
  func.func @transform_5(%arg0: i32) -> (i32, i32) {
    %c0_i32 = arith.constant 0 : i32
    %c0_i32_0 = arith.constant 0 : i32
    return %arg0, %c0_i32 : i32, i32
  }
}

</mosaic_0001>

<llo_original>
// kernel: projection_head.1
$region0: #{projection_head.1}
  #allocation0 [shape = 'u32[]', space=smem, size = 0x4, offset = 0x4, fixed_abs, tag = 'smem constant byte address 0x4 - core index']
  #allocation1 [shape = 'u32[72,128]{1,0:T(1,128)}', space=vmem, size = 0x9000, scoped, tag = 'internal scratch']
  %s0 = inlined_call_operand.hbm [shape: f32[8,512], index: 0, kind: input, shape index: {}]
  %s1 = inlined_call_operand.hbm [shape: bf16[512,512], index: 1, kind: input, shape index: {}]
  %s2 = inlined_call_operand.hbm [shape: f32[1,512], index: 2, kind: input, shape index: {}]
  %s3 = inlined_call_operand.hbm [shape: bf16[512,256], index: 3, kind: input, shape index: {}]
  %s4 = inlined_call_operand.vmem [shape: f32[1,256], index: 4, kind: input, shape index: {}]
  %s5 = inlined_call_operand.hbm [shape: f32[8,256], index: 5, kind: output, shape index: {}]
  %s6 = sld [smem:[#allocation0]]
  $region46: #{projection_head.1} parent=0
    _
  %s8 = ssub.s32 1, %s6
  %s9 = scalar_select 0, %s8, %s6
  $region1: #{projection_head.1} parent=0
    #allocation2 [shape = 'u8[16384]{0}', space=vmem, size = 0x4000, scoped, tag = 'input window, operand 0, single buffered']
    #allocation3 [shape = 's32[1]{0}', space=sflag, size = 0x4, scoped, tag = 'scoped memory for projection_head.1']
    #allocation4 [shape = 's32[1]{0}', space=sflag, size = 0x4, scoped, tag = 'scoped memory for projection_head.1']
    #allocation5 [shape = 'u8[524288]{0}', space=vmem, size = 0x80000, scoped, tag = 'input window, operand 1, single buffered']
    #allocation6 [shape = 's32[1]{0}', space=sflag, size = 0x4, scoped, tag = 'scoped memory for projection_head.1']
    #allocation7 [shape = 'u8[2048]{0}', space=vmem, size = 0x800, scoped, tag = 'input window, operand 2, single buffered']
    #allocation8 [shape = 'u8[262144]{0}', space=vmem, size = 0x40000, scoped, tag = 'input window, operand 3, single buffered']
    #allocation9 [shape = 's32[1]{0}', space=sflag, size = 0x4, scoped, tag = 'scoped memory for projection_head.1']
    #allocation10 [shape = 'u8[8192]{0}', space=vmem, size = 0x2000, scoped, tag = 'output window, operand 0, single buffered']
    %10 = vsyncpa [#allocation3], 0
    %11 = vsyncpa [#allocation6], 0
    %12 = vsyncpa [#allocation9], 0
    %13 = vsyncpa [#allocation4], 0
    // Predicated region
    $region2: #{projection_head.1} parent=1 // pred_check
      _
    $region3: #{projection_head.1} parent=1 // pred_check_branch
      %15 = sbr.rel (0) target = $region5
    $region4: #{projection_head.1} parent=1 // pred_region
      %17 = vsyncadd [#allocation3], 0
      %s19 = sshll.u32 %s0, 4
      %s20 = int_to_ptr.hbm [resolvable:$true] %s19
      %s21 = sshll.u32 [#allocation2], 4
      %s22 = int_to_ptr.vmem [resolvable:$true] %s21
      %24 = dma.hbm_to_vmem [thread:$0]  %s20, 512, %s22, [#allocation3]
    $region5: #{projection_head.1} parent=1 // pred_fallthru
      _
    // Predicated region
    $region6: #{projection_head.1} parent=1 // pred_check
      _
    $region7: #{projection_head.1} parent=1 // pred_check_branch
      %26 = sbr.rel (0) target = $region9
    $region8: #{projection_head.1} parent=1 // pred_region
      %28 = vsyncadd [#allocation6], 0
      %s29 = sshll.u32 %s1, 4
      %s30 = int_to_ptr.hbm [resolvable:$true] %s29
      %s31 = sshll.u32 [#allocation5], 4
      %s32 = int_to_ptr.vmem [resolvable:$true] %s31
      %37 = dma.hbm_to_vmem [thread:$0]  %s30, 16384, %s32, [#allocation6], 256, 256, 16
    $region9: #{projection_head.1} parent=1 // pred_fallthru
      _
    // Predicated region
    $region10: #{projection_head.1} parent=1 // pred_check
      _
    $region11: #{projection_head.1} parent=1 // pred_check_branch
      %39 = sbr.rel (0) target = $region13
    $region12: #{projection_head.1} parent=1 // pred_region
      %41 = vsyncadd [#allocation6], 0
      %s43 = sshll.u32 %s2, 4
      %s44 = int_to_ptr.hbm [resolvable:$true] %s43
      %s45 = sshll.u32 [#allocation7], 4
      %s46 = int_to_ptr.vmem [resolvable:$true] %s45
      %48 = dma.hbm_to_vmem [thread:$0]  %s44, 64, %s46, [#allocation6]
    $region13: #{projection_head.1} parent=1 // pred_fallthru
      _
    // Predicated region
    $region14: #{projection_head.1} parent=1 // pred_check
      _
    $region15: #{projection_head.1} parent=1 // pred_check_branch
      %50 = sbr.rel (0) target = $region17
    $region16: #{projection_head.1} parent=1 // pred_region
      %52 = vsyncadd [#allocation9], 0
      %s53 = sshll.u32 %s3, 4
      %s54 = int_to_ptr.hbm [resolvable:$true] %s53
      %s55 = sshll.u32 [#allocation8], 4
      %s56 = int_to_ptr.vmem [resolvable:$true] %s55
      %61 = dma.hbm_to_vmem [thread:$0]  %s54, 8192, %s56, [#allocation9], 128, 128, 8
    $region17: #{projection_head.1} parent=1 // pred_fallthru
      _
    // Predicated region
    $region18: #{projection_head.1} parent=1 // pred_check
      _
    $region19: #{projection_head.1} parent=1 // pred_check_branch
      %63 = sbr.rel (0) target = $region21
    $region20: #{projection_head.1} parent=1 // pred_region
      _
    $region21: #{projection_head.1} parent=1 // pred_fallthru
      _
    // Predicated region
    $region22: #{projection_head.1} parent=1 // pred_check
      _
    $region23: #{projection_head.1} parent=1 // pred_check_branch
      %65 = sbr.rel (0) target = $region25
    $region24: #{projection_head.1} parent=1 // pred_region
      %67 = dma.done [#allocation3], 512
    $region25: #{projection_head.1} parent=1 // pred_fallthru
      _
    // Predicated region
    $region26: #{projection_head.1} parent=1 // pred_check
      _
    $region27: #{projection_head.1} parent=1 // pred_check_branch
      %69 = sbr.rel (0) target = $region29
    $region28: #{projection_head.1} parent=1 // pred_region
      %71 = dma.done [#allocation6], 16384
    $region29: #{projection_head.1} parent=1 // pred_fallthru
      _
    // Predicated region
    $region30: #{projection_head.1} parent=1 // pred_check
      _
    $region31: #{projection_head.1} parent=1 // pred_check_branch
      %73 = sbr.rel (0) target = $region33
    $region32: #{projection_head.1} parent=1 // pred_region
      %75 = dma.done [#allocation6], 64
    $region33: #{projection_head.1} parent=1 // pred_fallthru
      _
    // Predicated region
    $region34: #{projection_head.1} parent=1 // pred_check
      _
    $region35: #{projection_head.1} parent=1 // pred_check_branch
      %77 = sbr.rel (0) target = $region37
    $region36: #{projection_head.1} parent=1 // pred_region
      %79 = dma.done [#allocation9], 8192
    $region37: #{projection_head.1} parent=1 // pred_fallthru
      _
    %v80 = vld [vmem:[#allocation2] sm:$0xff]
    %v81 = vld [vmem:[#allocation2 + $0x8] sm:$0xff]
    %v82 = vld [vmem:[#allocation2 + $0x10] sm:$0xff]
    %v83 = vld [vmem:[#allocation2 + $0x18] sm:$0xff]
    %v84 = vpack.c.bf16 %v80, %v80
    %v85 = vpack.c.bf16 %v81, %v81
    %v86 = vpack.c.bf16 %v82, %v82
    %v87 = vpack.c.bf16 %v83, %v83
    %v88 = vld [vmem:[#allocation5] sm:$0xff]
    %v89 = vld [vmem:[#allocation5 + $0x8] sm:$0xff]
    %v90 = vld [vmem:[#allocation5 + $0x10] sm:$0xff]
    %v91 = vld [vmem:[#allocation5 + $0x18] sm:$0xff]
    %v92 = vld [vmem:[#allocation5 + $0x20] sm:$0xff]
    %v93 = vld [vmem:[#allocation5 + $0x28] sm:$0xff]
    %v94 = vld [vmem:[#allocation5 + $0x30] sm:$0xff]
    %v95 = vld [vmem:[#allocation5 + $0x38] sm:$0xff]
    %v96 = vld [vmem:[#allocation5 + $0x40] sm:$0xff]
    %v97 = vld [vmem:[#allocation5 + $0x48] sm:$0xff]
    %v98 = vld [vmem:[#allocation5 + $0x50] sm:$0xff]
    %v99 = vld [vmem:[#allocation5 + $0x58] sm:$0xff]
    %v100 = vld [vmem:[#allocation5 + $0x60] sm:$0xff]
    %v101 = vld [vmem:[#allocation5 + $0x68] sm:$0xff]
    %v102 = vld [vmem:[#allocation5 + $0x70] sm:$0xff]
    %v103 = vld [vmem:[#allocation5 + $0x78] sm:$0xff]
    %v104 = vld [vmem:[#allocation5 + $0x80] sm:$0xff]
    %v105 = vld [vmem:[#allocation5 + $0x88] sm:$0xff]
    %v106 = vld [vmem:[#allocation5 + $0x90] sm:$0xff]
    %v107 = vld [vmem:[#allocation5 + $0x98] sm:$0xff]
    %v108 = vld [vmem:[#allocation5 + $0xa0] sm:$0xff]
    %v109 = vld [vmem:[#allocation5 + $0xa8] sm:$0xff]
    %v110 = vld [vmem:[#allocation5 + $0xb0] sm:$0xff]
    %v111 = vld [vmem:[#allocation5 + $0xb8] sm:$0xff]
    %v112 = vld [vmem:[#allocation5 + $0xc0] sm:$0xff]
    %v113 = vld [vmem:[#allocation5 + $0xc8] sm:$0xff]
    %v114 = vld [vmem:[#allocation5 + $0xd0] sm:$0xff]
    %v115 = vld [vmem:[#allocation5 + $0xd8] sm:$0xff]
    %v116 = vld [vmem:[#allocation5 + $0xe0] sm:$0xff]
    %v117 = vld [vmem:[#allocation5 + $0xe8] sm:$0xff]
    %v118 = vld [vmem:[#allocation5 + $0xf0] sm:$0xff]
    %v119 = vld [vmem:[#allocation5 + $0xf8] sm:$0xff]
    %v120 = vld [vmem:[#allocation5 + $0x100] sm:$0xff]
    %v121 = vld [vmem:[#allocation5 + $0x108] sm:$0xff]
    %v122 = vld [vmem:[#allocation5 + $0x110] sm:$0xff]
    %v123 = vld [vmem:[#allocation5 + $0x118] sm:$0xff]
    %v124 = vld [vmem:[#allocation5 + $0x120] sm:$0xff]
    %v125 = vld [vmem:[#allocation5 + $0x128] sm:$0xff]
    %v126 = vld [vmem:[#allocation5 + $0x130] sm:$0xff]
    %v127 = vld [vmem:[#allocation5 + $0x138] sm:$0xff]
    %v128 = vld [vmem:[#allocation5 + $0x140] sm:$0xff]
    %v129 = vld [vmem:[#allocation5 + $0x148] sm:$0xff]
    %v130 = vld [vmem:[#allocation5 + $0x150] sm:$0xff]
    %v131 = vld [vmem:[#allocation5 + $0x158] sm:$0xff]
    %v132 = vld [vmem:[#allocation5 + $0x160] sm:$0xff]
    %v133 = vld [vmem:[#allocation5 + $0x168] sm:$0xff]
    %v134 = vld [vmem:[#allocation5 + $0x170] sm:$0xff]
    %v135 = vld [vmem:[#allocation5 + $0x178] sm:$0xff]
    %v136 = vld [vmem:[#allocation5 + $0x180] sm:$0xff]
    %v137 = vld [vmem:[#allocation5 + $0x188] sm:$0xff]
    %v138 = vld [vmem:[#allocation5 + $0x190] sm:$0xff]
    %v139 = vld [vmem:[#allocation5 + $0x198] sm:$0xff]
    %v140 = vld [vmem:[#allocation5 + $0x1a0] sm:$0xff]
    %v141 = vld [vmem:[#allocation5 + $0x1a8] sm:$0xff]
    %v142 = vld [vmem:[#allocation5 + $0x1b0] sm:$0xff]
    %v143 = vld [vmem:[#allocation5 + $0x1b8] sm:$0xff]
    %v144 = vld [vmem:[#allocation5 + $0x1c0] sm:$0xff]
    %v145 = vld [vmem:[#allocation5 + $0x1c8] sm:$0xff]
    %v146 = vld [vmem:[#allocation5 + $0x1d0] sm:$0xff]
    %v147 = vld [vmem:[#allocation5 + $0x1d8] sm:$0xff]
    %v148 = vld [vmem:[#allocation5 + $0x1e0] sm:$0xff]
    %v149 = vld [vmem:[#allocation5 + $0x1e8] sm:$0xff]
    %v150 = vld [vmem:[#allocation5 + $0x1f0] sm:$0xff]
    %v151 = vld [vmem:[#allocation5 + $0x1f8] sm:$0xff]
    %v152 = vld [vmem:[#allocation5 + $0x200] sm:$0xff]
    %v153 = vld [vmem:[#allocation5 + $0x208] sm:$0xff]
    %v154 = vld [vmem:[#allocation5 + $0x210] sm:$0xff]
    %v155 = vld [vmem:[#allocation5 + $0x218] sm:$0xff]
    %v156 = vld [vmem:[#allocation5 + $0x220] sm:$0xff]
    %v157 = vld [vmem:[#allocation5 + $0x228] sm:$0xff]
    %v158 = vld [vmem:[#allocation5 + $0x230] sm:$0xff]
    %v159 = vld [vmem:[#allocation5 + $0x238] sm:$0xff]
    %v160 = vld [vmem:[#allocation5 + $0x240] sm:$0xff]
    %v161 = vld [vmem:[#allocation5 + $0x248] sm:$0xff]
    %v162 = vld [vmem:[#allocation5 + $0x250] sm:$0xff]
    %v163 = vld [vmem:[#allocation5 + $0x258] sm:$0xff]
    %v164 = vld [vmem:[#allocation5 + $0x260] sm:$0xff]
    %v165 = vld [vmem:[#allocation5 + $0x268] sm:$0xff]
    %v166 = vld [vmem:[#allocation5 + $0x270] sm:$0xff]
    %v167 = vld [vmem:[#allocation5 + $0x278] sm:$0xff]
    %v168 = vld [vmem:[#allocation5 + $0x280] sm:$0xff]
    %v169 = vld [vmem:[#allocation5 + $0x288] sm:$0xff]
    %v170 = vld [vmem:[#allocation5 + $0x290] sm:$0xff]
    %v171 = vld [vmem:[#allocation5 + $0x298] sm:$0xff]
    %v172 = vld [vmem:[#allocation5 + $0x2a0] sm:$0xff]
    %v173 = vld [vmem:[#allocation5 + $0x2a8] sm:$0xff]
    %v174 = vld [vmem:[#allocation5 + $0x2b0] sm:$0xff]
    %v175 = vld [vmem:[#allocation5 + $0x2b8] sm:$0xff]
    %v176 = vld [vmem:[#allocation5 + $0x2c0] sm:$0xff]
    %v177 = vld [vmem:[#allocation5 + $0x2c8] sm:$0xff]
    %v178 = vld [vmem:[#allocation5 + $0x2d0] sm:$0xff]
    %v179 = vld [vmem:[#allocation5 + $0x2d8] sm:$0xff]
    %v180 = vld [vmem:[#allocation5 + $0x2e0] sm:$0xff]
    %v181 = vld [vmem:[#allocation5 + $0x2e8] sm:$0xff]
    %v182 = vld [vmem:[#allocation5 + $0x2f0] sm:$0xff]
    %v183 = vld [vmem:[#allocation5 + $0x2f8] sm:$0xff]
    %v184 = vld [vmem:[#allocation5 + $0x300] sm:$0xff]
    %v185 = vld [vmem:[#allocation5 + $0x308] sm:$0xff]
    %v186 = vld [vmem:[#allocation5 + $0x310] sm:$0xff]
    %v187 = vld [vmem:[#allocation5 + $0x318] sm:$0xff]
    %v188 = vld [vmem:[#allocation5 + $0x320] sm:$0xff]
    %v189 = vld [vmem:[#allocation5 + $0x328] sm:$0xff]
    %v190 = vld [vmem:[#allocation5 + $0x330] sm:$0xff]
    %v191 = vld [vmem:[#allocation5 + $0x338] sm:$0xff]
    %v192 = vld [vmem:[#allocation5 + $0x340] sm:$0xff]
    %v193 = vld [vmem:[#allocation5 + $0x348] sm:$0xff]
    %v194 = vld [vmem:[#allocation5 + $0x350] sm:$0xff]
    %v195 = vld [vmem:[#allocation5 + $0x358] sm:$0xff]
    %v196 = vld [vmem:[#allocation5 + $0x360] sm:$0xff]
    %v197 = vld [vmem:[#allocation5 + $0x368] sm:$0xff]
    %v198 = vld [vmem:[#allocation5 + $0x370] sm:$0xff]
    %v199 = vld [vmem:[#allocation5 + $0x378] sm:$0xff]
    %v200 = vld [vmem:[#allocation5 + $0x380] sm:$0xff]
    %v201 = vld [vmem:[#allocation5 + $0x388] sm:$0xff]
    %v202 = vld [vmem:[#allocation5 + $0x390] sm:$0xff]
    %v203 = vld [vmem:[#allocation5 + $0x398] sm:$0xff]
    %v204 = vld [vmem:[#allocation5 + $0x3a0] sm:$0xff]
    %v205 = vld [vmem:[#allocation5 + $0x3a8] sm:$0xff]
    %v206 = vld [vmem:[#allocation5 + $0x3b0] sm:$0xff]
    %v207 = vld [vmem:[#allocation5 + $0x3b8] sm:$0xff]
    %v208 = vld [vmem:[#allocation5 + $0x3c0] sm:$0xff]
    %v209 = vld [vmem:[#allocation5 + $0x3c8] sm:$0xff]
    %v210 = vld [vmem:[#allocation5 + $0x3d0] sm:$0xff]
    %v211 = vld [vmem:[#allocation5 + $0x3d8] sm:$0xff]
    %v212 = vld [vmem:[#allocation5 + $0x3e0] sm:$0xff]
    %v213 = vld [vmem:[#allocation5 + $0x3e8] sm:$0xff]
    %v214 = vld [vmem:[#allocation5 + $0x3f0] sm:$0xff]
    %v215 = vld [vmem:[#allocation5 + $0x3f8] sm:$0xff]
    %v216 = vld [vmem:[#allocation7] sm:$0xf]
    %v218 = vperm.slane %v216, 0
    %v219 = vperm.slane %v216, 1
    %v220 = vperm.slane %v216, 2
    %v221 = vperm.slane %v216, 3
    %v354 = vunpack.c.l.b16 %v88
    %v355 = vunpack.c.h.b16 %v88
    %v356 = vunpack.c.l.b16 %v89
    %v357 = vunpack.c.h.b16 %v89
    %v358 = vunpack.c.l.b16 %v90
    %v359 = vunpack.c.h.b16 %v90
    %v360 = vunpack.c.l.b16 %v91
    %v361 = vunpack.c.h.b16 %v91
    %v362 = vunpack.c.l.b16 %v92
    %v363 = vunpack.c.h.b16 %v92
    %v364 = vunpack.c.l.b16 %v93
    %v365 = vunpack.c.h.b16 %v93
    %v366 = vunpack.c.l.b16 %v94
    %v367 = vunpack.c.h.b16 %v94
    %v368 = vunpack.c.l.b16 %v95
    %v369 = vunpack.c.h.b16 %v95
    %v370 = vunpack.c.l.b16 %v96
    %v371 = vunpack.c.h.b16 %v96
    %v372 = vunpack.c.l.b16 %v97
    %v373 = vunpack.c.h.b16 %v97
    %v374 = vunpack.c.l.b16 %v98
    %v375 = vunpack.c.h.b16 %v98
    %v376 = vunpack.c.l.b16 %v99
    %v377 = vunpack.c.h.b16 %v99
    %v378 = vunpack.c.l.b16 %v100
    %v379 = vunpack.c.h.b16 %v100
    %v380 = vunpack.c.l.b16 %v101
    %v381 = vunpack.c.h.b16 %v101
    %v382 = vunpack.c.l.b16 %v102
    %v383 = vunpack.c.h.b16 %v102
    %v384 = vunpack.c.l.b16 %v103
    %v385 = vunpack.c.h.b16 %v103
    %v386 = vunpack.c.l.b16 %v104
    %v387 = vunpack.c.h.b16 %v104
    %v388 = vunpack.c.l.b16 %v105
    %v389 = vunpack.c.h.b16 %v105
    %v390 = vunpack.c.l.b16 %v106
    %v391 = vunpack.c.h.b16 %v106
    %v392 = vunpack.c.l.b16 %v107
    %v393 = vunpack.c.h.b16 %v107
    %v394 = vunpack.c.l.b16 %v108
    %v395 = vunpack.c.h.b16 %v108
    %v396 = vunpack.c.l.b16 %v109
    %v397 = vunpack.c.h.b16 %v109
    %v398 = vunpack.c.l.b16 %v110
    %v399 = vunpack.c.h.b16 %v110
    %v400 = vunpack.c.l.b16 %v111
    %v401 = vunpack.c.h.b16 %v111
    %v402 = vunpack.c.l.b16 %v112
    %v403 = vunpack.c.h.b16 %v112
    %v404 = vunpack.c.l.b16 %v113
    %v405 = vunpack.c.h.b16 %v113
    %v406 = vunpack.c.l.b16 %v114
    %v407 = vunpack.c.h.b16 %v114
    %v408 = vunpack.c.l.b16 %v115
    %v409 = vunpack.c.h.b16 %v115
    %v410 = vunpack.c.l.b16 %v116
    %v411 = vunpack.c.h.b16 %v116
    %v412 = vunpack.c.l.b16 %v117
    %v413 = vunpack.c.h.b16 %v117
    %v414 = vunpack.c.l.b16 %v118
    %v415 = vunpack.c.h.b16 %v118
    %v416 = vunpack.c.l.b16 %v119
    %v417 = vunpack.c.h.b16 %v119
    %v418 = vunpack.c.l.b16 %v120
    %v419 = vunpack.c.h.b16 %v120
    %v420 = vunpack.c.l.b16 %v121
    %v421 = vunpack.c.h.b16 %v121
    %v422 = vunpack.c.l.b16 %v122
    %v423 = vunpack.c.h.b16 %v122
    %v424 = vunpack.c.l.b16 %v123
    %v425 = vunpack.c.h.b16 %v123
    %v426 = vunpack.c.l.b16 %v124
    %v427 = vunpack.c.h.b16 %v124
    %v428 = vunpack.c.l.b16 %v125
    %v429 = vunpack.c.h.b16 %v125
    %v430 = vunpack.c.l.b16 %v126
    %v431 = vunpack.c.h.b16 %v126
    %v432 = vunpack.c.l.b16 %v127
    %v433 = vunpack.c.h.b16 %v127
    %v434 = vunpack.c.l.b16 %v128
    %v435 = vunpack.c.h.b16 %v128
    %v436 = vunpack.c.l.b16 %v129
    %v437 = vunpack.c.h.b16 %v129
    %v438 = vunpack.c.l.b16 %v130
    %v439 = vunpack.c.h.b16 %v130
    %v440 = vunpack.c.l.b16 %v131
    %v441 = vunpack.c.h.b16 %v131
    %v442 = vunpack.c.l.b16 %v132
    %v443 = vunpack.c.h.b16 %v132
    %v444 = vunpack.c.l.b16 %v133
    %v445 = vunpack.c.h.b16 %v133
    %v446 = vunpack.c.l.b16 %v134
    %v447 = vunpack.c.h.b16 %v134
    %v448 = vunpack.c.l.b16 %v135
    %v449 = vunpack.c.h.b16 %v135
    %v450 = vunpack.c.l.b16 %v136
    %v451 = vunpack.c.h.b16 %v136
    %v452 = vunpack.c.l.b16 %v137
    %v453 = vunpack.c.h.b16 %v137
    %v454 = vunpack.c.l.b16 %v138
    %v455 = vunpack.c.h.b16 %v138
    %v456 = vunpack.c.l.b16 %v139
    %v457 = vunpack.c.h.b16 %v139
    %v458 = vunpack.c.l.b16 %v140
    %v459 = vunpack.c.h.b16 %v140
    %v460 = vunpack.c.l.b16 %v141
    %v461 = vunpack.c.h.b16 %v141
    %v462 = vunpack.c.l.b16 %v142
    %v463 = vunpack.c.h.b16 %v142
    %v464 = vunpack.c.l.b16 %v143
    %v465 = vunpack.c.h.b16 %v143
    %v466 = vunpack.c.l.b16 %v144
    %v467 = vunpack.c.h.b16 %v144
    %v468 = vunpack.c.l.b16 %v145
    %v469 = vunpack.c.h.b16 %v145
    %v470 = vunpack.c.l.b16 %v146
    %v471 = vunpack.c.h.b16 %v146
    %v472 = vunpack.c.l.b16 %v147
    %v473 = vunpack.c.h.b16 %v147
    %v474 = vunpack.c.l.b16 %v148
    %v475 = vunpack.c.h.b16 %v148
    %v476 = vunpack.c.l.b16 %v149
    %v477 = vunpack.c.h.b16 %v149
    %v478 = vunpack.c.l.b16 %v150
    %v479 = vunpack.c.h.b16 %v150
    %v480 = vunpack.c.l.b16 %v151
    %v481 = vunpack.c.h.b16 %v151
    %v482 = vunpack.c.l.b16 %v152
    %v483 = vunpack.c.h.b16 %v152
    %v484 = vunpack.c.l.b16 %v153
    %v485 = vunpack.c.h.b16 %v153
    %v486 = vunpack.c.l.b16 %v154
    %v487 = vunpack.c.h.b16 %v154
    %v488 = vunpack.c.l.b16 %v155
    %v489 = vunpack.c.h.b16 %v155
    %v490 = vunpack.c.l.b16 %v156
    %v491 = vunpack.c.h.b16 %v156
    %v492 = vunpack.c.l.b16 %v157
    %v493 = vunpack.c.h.b16 %v157
    %v494 = vunpack.c.l.b16 %v158
    %v495 = vunpack.c.h.b16 %v158
    %v496 = vunpack.c.l.b16 %v159
    %v497 = vunpack.c.h.b16 %v159
    %v498 = vunpack.c.l.b16 %v160
    %v499 = vunpack.c.h.b16 %v160
    %v500 = vunpack.c.l.b16 %v161
    %v501 = vunpack.c.h.b16 %v161
    %v502 = vunpack.c.l.b16 %v162
    %v503 = vunpack.c.h.b16 %v162
    %v504 = vunpack.c.l.b16 %v163
    %v505 = vunpack.c.h.b16 %v163
    %v506 = vunpack.c.l.b16 %v164
    %v507 = vunpack.c.h.b16 %v164
    %v508 = vunpack.c.l.b16 %v165
    %v509 = vunpack.c.h.b16 %v165
    %v510 = vunpack.c.l.b16 %v166
    %v511 = vunpack.c.h.b16 %v166
    %v512 = vunpack.c.l.b16 %v167
    %v513 = vunpack.c.h.b16 %v167
    %v514 = vunpack.c.l.b16 %v168
    %v515 = vunpack.c.h.b16 %v168
    %v516 = vunpack.c.l.b16 %v169
    %v517 = vunpack.c.h.b16 %v169
    %v518 = vunpack.c.l.b16 %v170
    %v519 = vunpack.c.h.b16 %v170
    %v520 = vunpack.c.l.b16 %v171
    %v521 = vunpack.c.h.b16 %v171
    %v522 = vunpack.c.l.b16 %v172
    %v523 = vunpack.c.h.b16 %v172
    %v524 = vunpack.c.l.b16 %v173
    %v525 = vunpack.c.h.b16 %v173
    %v526 = vunpack.c.l.b16 %v174
    %v527 = vunpack.c.h.b16 %v174
    %v528 = vunpack.c.l.b16 %v175
    %v529 = vunpack.c.h.b16 %v175
    %v530 = vunpack.c.l.b16 %v176
    %v531 = vunpack.c.h.b16 %v176
    %v532 = vunpack.c.l.b16 %v177
    %v533 = vunpack.c.h.b16 %v177
    %v534 = vunpack.c.l.b16 %v178
    %v535 = vunpack.c.h.b16 %v178
    %v536 = vunpack.c.l.b16 %v179
    %v537 = vunpack.c.h.b16 %v179
    %v538 = vunpack.c.l.b16 %v180
    %v539 = vunpack.c.h.b16 %v180
    %v540 = vunpack.c.l.b16 %v181
    %v541 = vunpack.c.h.b16 %v181
    %v542 = vunpack.c.l.b16 %v182
    %v543 = vunpack.c.h.b16 %v182
    %v544 = vunpack.c.l.b16 %v183
    %v545 = vunpack.c.h.b16 %v183
    %v546 = vunpack.c.l.b16 %v184
    %v547 = vunpack.c.h.b16 %v184
    %v548 = vunpack.c.l.b16 %v185
    %v549 = vunpack.c.h.b16 %v185
    %v550 = vunpack.c.l.b16 %v186
    %v551 = vunpack.c.h.b16 %v186
    %v552 = vunpack.c.l.b16 %v187
    %v553 = vunpack.c.h.b16 %v187
    %v554 = vunpack.c.l.b16 %v188
    %v555 = vunpack.c.h.b16 %v188
    %v556 = vunpack.c.l.b16 %v189
    %v557 = vunpack.c.h.b16 %v189
    %v558 = vunpack.c.l.b16 %v190
    %v559 = vunpack.c.h.b16 %v190
    %v560 = vunpack.c.l.b16 %v191
    %v561 = vunpack.c.h.b16 %v191
    %v562 = vunpack.c.l.b16 %v192
    %v563 = vunpack.c.h.b16 %v192
    %v564 = vunpack.c.l.b16 %v193
    %v565 = vunpack.c.h.b16 %v193
    %v566 = vunpack.c.l.b16 %v194
    %v567 = vunpack.c.h.b16 %v194
    %v568 = vunpack.c.l.b16 %v195
    %v569 = vunpack.c.h.b16 %v195
    %v570 = vunpack.c.l.b16 %v196
    %v571 = vunpack.c.h.b16 %v196
    %v572 = vunpack.c.l.b16 %v197
    %v573 = vunpack.c.h.b16 %v197
    %v574 = vunpack.c.l.b16 %v198
    %v575 = vunpack.c.h.b16 %v198
    %v576 = vunpack.c.l.b16 %v199
    %v577 = vunpack.c.h.b16 %v199
    %v578 = vunpack.c.l.b16 %v200
    %v579 = vunpack.c.h.b16 %v200
    %v580 = vunpack.c.l.b16 %v201
    %v581 = vunpack.c.h.b16 %v201
    %v582 = vunpack.c.l.b16 %v202
    %v583 = vunpack.c.h.b16 %v202
    %v584 = vunpack.c.l.b16 %v203
    %v585 = vunpack.c.h.b16 %v203
    %v586 = vunpack.c.l.b16 %v204
    %v587 = vunpack.c.h.b16 %v204
    %v588 = vunpack.c.l.b16 %v205
    %v589 = vunpack.c.h.b16 %v205
    %v590 = vunpack.c.l.b16 %v206
    %v591 = vunpack.c.h.b16 %v206
    %v592 = vunpack.c.l.b16 %v207
    %v593 = vunpack.c.h.b16 %v207
    %v594 = vunpack.c.l.b16 %v208
    %v595 = vunpack.c.h.b16 %v208
    %v596 = vunpack.c.l.b16 %v209
    %v597 = vunpack.c.h.b16 %v209
    %v598 = vunpack.c.l.b16 %v210
    %v599 = vunpack.c.h.b16 %v210
    %v600 = vunpack.c.l.b16 %v211
    %v601 = vunpack.c.h.b16 %v211
    %v602 = vunpack.c.l.b16 %v212
    %v603 = vunpack.c.h.b16 %v212
    %v604 = vunpack.c.l.b16 %v213
    %v605 = vunpack.c.h.b16 %v213
    %v606 = vunpack.c.l.b16 %v214
    %v607 = vunpack.c.h.b16 %v214
    %v608 = vunpack.c.l.b16 %v215
    %v609 = vunpack.c.h.b16 %v215
    %v610 = vpack.c.b16 %v358, %v354
    %v611 = vpack.c.b16 %v359, %v355
    %v612 = vpack.c.b16 %v360, %v356
    %v613 = vpack.c.b16 %v361, %v357
    %v614 = vpack.c.b16 %v366, %v362
    %v615 = vpack.c.b16 %v367, %v363
    %v616 = vpack.c.b16 %v368, %v364
    %v617 = vpack.c.b16 %v369, %v365
    %v618 = vpack.c.b16 %v374, %v370
    %v619 = vpack.c.b16 %v375, %v371
    %v620 = vpack.c.b16 %v376, %v372
    %v621 = vpack.c.b16 %v377, %v373
    %v622 = vpack.c.b16 %v382, %v378
    %v623 = vpack.c.b16 %v383, %v379
    %v624 = vpack.c.b16 %v384, %v380
    %v625 = vpack.c.b16 %v385, %v381
    %v626 = vpack.c.b16 %v390, %v386
    %v627 = vpack.c.b16 %v391, %v387
    %v628 = vpack.c.b16 %v392, %v388
    %v629 = vpack.c.b16 %v393, %v389
    %v630 = vpack.c.b16 %v398, %v394
    %v631 = vpack.c.b16 %v399, %v395
    %v632 = vpack.c.b16 %v400, %v396
    %v633 = vpack.c.b16 %v401, %v397
    %v634 = vpack.c.b16 %v406, %v402
    %v635 = vpack.c.b16 %v407, %v403
    %v636 = vpack.c.b16 %v408, %v404
    %v637 = vpack.c.b16 %v409, %v405
    %v638 = vpack.c.b16 %v414, %v410
    %v639 = vpack.c.b16 %v415, %v411
    %v640 = vpack.c.b16 %v416, %v412
    %v641 = vpack.c.b16 %v417, %v413
    %v642 = vpack.c.b16 %v422, %v418
    %v643 = vpack.c.b16 %v423, %v419
    %v644 = vpack.c.b16 %v424, %v420
    %v645 = vpack.c.b16 %v425, %v421
    %v646 = vpack.c.b16 %v430, %v426
    %v647 = vpack.c.b16 %v431, %v427
    %v648 = vpack.c.b16 %v432, %v428
    %v649 = vpack.c.b16 %v433, %v429
    %v650 = vpack.c.b16 %v438, %v434
    %v651 = vpack.c.b16 %v439, %v435
    %v652 = vpack.c.b16 %v440, %v436
    %v653 = vpack.c.b16 %v441, %v437
    %v654 = vpack.c.b16 %v446, %v442
    %v655 = vpack.c.b16 %v447, %v443
    %v656 = vpack.c.b16 %v448, %v444
    %v657 = vpack.c.b16 %v449, %v445
    %v658 = vpack.c.b16 %v454, %v450
    %v659 = vpack.c.b16 %v455, %v451
    %v660 = vpack.c.b16 %v456, %v452
    %v661 = vpack.c.b16 %v457, %v453
    %v662 = vpack.c.b16 %v462, %v458
    %v663 = vpack.c.b16 %v463, %v459
    %v664 = vpack.c.b16 %v464, %v460
    %v665 = vpack.c.b16 %v465, %v461
    %v666 = vpack.c.b16 %v470, %v466
    %v667 = vpack.c.b16 %v471, %v467
    %v668 = vpack.c.b16 %v472, %v468
    %v669 = vpack.c.b16 %v473, %v469
    %v670 = vpack.c.b16 %v478, %v474
    %v671 = vpack.c.b16 %v479, %v475
    %v672 = vpack.c.b16 %v480, %v476
    %v673 = vpack.c.b16 %v481, %v477
    %v674 = vpack.c.b16 %v486, %v482
    %v675 = vpack.c.b16 %v487, %v483
    %v676 = vpack.c.b16 %v488, %v484
    %v677 = vpack.c.b16 %v489, %v485
    %v678 = vpack.c.b16 %v494, %v490
    %v679 = vpack.c.b16 %v495, %v491
    %v680 = vpack.c.b16 %v496, %v492
    %v681 = vpack.c.b16 %v497, %v493
    %v682 = vpack.c.b16 %v502, %v498
    %v683 = vpack.c.b16 %v503, %v499
    %v684 = vpack.c.b16 %v504, %v500
    %v685 = vpack.c.b16 %v505, %v501
    %v686 = vpack.c.b16 %v510, %v506
    %v687 = vpack.c.b16 %v511, %v507
    %v688 = vpack.c.b16 %v512, %v508
    %v689 = vpack.c.b16 %v513, %v509
    %v690 = vpack.c.b16 %v518, %v514
    %v691 = vpack.c.b16 %v519, %v515
    %v692 = vpack.c.b16 %v520, %v516
    %v693 = vpack.c.b16 %v521, %v517
    %v694 = vpack.c.b16 %v526, %v522
    %v695 = vpack.c.b16 %v527, %v523
    %v696 = vpack.c.b16 %v528, %v524
    %v697 = vpack.c.b16 %v529, %v525
    %v698 = vpack.c.b16 %v534, %v530
    %v699 = vpack.c.b16 %v535, %v531
    %v700 = vpack.c.b16 %v536, %v532
    %v701 = vpack.c.b16 %v537, %v533
    %v702 = vpack.c.b16 %v542, %v538
    %v703 = vpack.c.b16 %v543, %v539
    %v704 = vpack.c.b16 %v544, %v540
    %v705 = vpack.c.b16 %v545, %v541
    %v706 = vpack.c.b16 %v550, %v546
    %v707 = vpack.c.b16 %v551, %v547
    %v708 = vpack.c.b16 %v552, %v548
    %v709 = vpack.c.b16 %v553, %v549
    %v710 = vpack.c.b16 %v558, %v554
    %v711 = vpack.c.b16 %v559, %v555
    %v712 = vpack.c.b16 %v560, %v556
    %v713 = vpack.c.b16 %v561, %v557
    %v714 = vpack.c.b16 %v566, %v562
    %v715 = vpack.c.b16 %v567, %v563
    %v716 = vpack.c.b16 %v568, %v564
    %v717 = vpack.c.b16 %v569, %v565
    %v718 = vpack.c.b16 %v574, %v570
    %v719 = vpack.c.b16 %v575, %v571
    %v720 = vpack.c.b16 %v576, %v572
    %v721 = vpack.c.b16 %v577, %v573
    %v722 = vpack.c.b16 %v582, %v578
    %v723 = vpack.c.b16 %v583, %v579
    %v724 = vpack.c.b16 %v584, %v580
    %v725 = vpack.c.b16 %v585, %v581
    %v726 = vpack.c.b16 %v590, %v586
    %v727 = vpack.c.b16 %v591, %v587
    %v728 = vpack.c.b16 %v592, %v588
    %v729 = vpack.c.b16 %v593, %v589
    %v730 = vpack.c.b16 %v598, %v594
    %v731 = vpack.c.b16 %v599, %v595
    %v732 = vpack.c.b16 %v600, %v596
    %v733 = vpack.c.b16 %v601, %v597
    %v734 = vpack.c.b16 %v606, %v602
    %v735 = vpack.c.b16 %v607, %v603
    %v736 = vpack.c.b16 %v608, %v604
    %v737 = vpack.c.b16 %v609, %v605
    %866 = vmatpush.bf16.msra.mxu0 %v638
    %867 = vmatpush.bf16.msra.mxu0 %v634
    %868 = vmatpush.bf16.msra.mxu0 %v630
    %869 = vmatpush.bf16.msra.mxu0 %v626
    %870 = vmatpush.bf16.msra.mxu0 %v622
    %871 = vmatpush.bf16.msra.mxu0 %v618
    %872 = vmatpush.bf16.msra.mxu0 %v614
    %873 = vmatpush.bf16.msra.mxu0 %v610
    %874 = vmatmul.bf16.gmra.mxu0 %v84
    %v875 = vpop.f32.mrf.mxu0
    %v876 = vadd.f32 %v218, %v875
    %v877 = vpop.f32.mrf.mxu0
    %878 = vdwg.mxu0
    %879 = vmatpush.bf16.msra.mxu0 %v670
    %880 = vmatpush.bf16.msra.mxu0 %v666
    %881 = vmatpush.bf16.msra.mxu0 %v662
    %882 = vmatpush.bf16.msra.mxu0 %v658
    %883 = vmatpush.bf16.msra.mxu0 %v654
    %884 = vmatpush.bf16.msra.mxu0 %v650
    %885 = vmatpush.bf16.msra.mxu0 %v646
    %886 = vmatpush.bf16.msra.mxu0 %v642
    %887 = vmatmul.bf16.gmra.mxu0 %v85
    %v888 = vpop.f32.mrf.mxu0
    %v889 = vadd.f32 %v876, %v888
    %v890 = vpop.f32.mrf.mxu0
    %891 = vdwg.mxu0
    %892 = vmatpush.bf16.msra.mxu0 %v702
    %893 = vmatpush.bf16.msra.mxu0 %v698
    %894 = vmatpush.bf16.msra.mxu0 %v694
    %895 = vmatpush.bf16.msra.mxu0 %v690
    %896 = vmatpush.bf16.msra.mxu0 %v686
    %897 = vmatpush.bf16.msra.mxu0 %v682
    %898 = vmatpush.bf16.msra.mxu0 %v678
    %899 = vmatpush.bf16.msra.mxu0 %v674
    %900 = vmatmul.bf16.gmra.mxu0 %v86
    %v901 = vpop.f32.mrf.mxu0
    %v902 = vadd.f32 %v889, %v901
    %v903 = vpop.f32.mrf.mxu0
    %904 = vdwg.mxu0
    %905 = vmatpush.bf16.msra.mxu0 %v734
    %906 = vmatpush.bf16.msra.mxu0 %v730
    %907 = vmatpush.bf16.msra.mxu0 %v726
    %908 = vmatpush.bf16.msra.mxu0 %v722
    %909 = vmatpush.bf16.msra.mxu0 %v718
    %910 = vmatpush.bf16.msra.mxu0 %v714
    %911 = vmatpush.bf16.msra.mxu0 %v710
    %912 = vmatpush.bf16.msra.mxu0 %v706
    %913 = vmatmul.bf16.gmra.mxu0 %v87
    %v914 = vpop.f32.mrf.mxu0
    %v915 = vadd.f32 %v902, %v914
    %v916 = vpop.f32.mrf.mxu0
    %917 = vdwg.mxu0
    %918 = vmatpush.bf16.msra.mxu0 %v639
    %919 = vmatpush.bf16.msra.mxu0 %v635
    %920 = vmatpush.bf16.msra.mxu0 %v631
    %921 = vmatpush.bf16.msra.mxu0 %v627
    %922 = vmatpush.bf16.msra.mxu0 %v623
    %923 = vmatpush.bf16.msra.mxu0 %v619
    %924 = vmatpush.bf16.msra.mxu0 %v615
    %925 = vmatpush.bf16.msra.mxu0 %v611
    %926 = vmatmul.bf16.gmra.mxu0 %v84
    %v927 = vpop.f32.mrf.mxu0
    %v928 = vadd.f32 %v219, %v927
    %v929 = vpop.f32.mrf.mxu0
    %930 = vdwg.mxu0
    %931 = vmatpush.bf16.msra.mxu0 %v671
    %932 = vmatpush.bf16.msra.mxu0 %v667
    %933 = vmatpush.bf16.msra.mxu0 %v663
    %934 = vmatpush.bf16.msra.mxu0 %v659
    %935 = vmatpush.bf16.msra.mxu0 %v655
    %936 = vmatpush.bf16.msra.mxu0 %v651
    %937 = vmatpush.bf16.msra.mxu0 %v647
    %938 = vmatpush.bf16.msra.mxu0 %v643
    %939 = vmatmul.bf16.gmra.mxu0 %v85
    %v940 = vpop.f32.mrf.mxu0
    %v941 = vadd.f32 %v928, %v940
    %v942 = vpop.f32.mrf.mxu0
    %943 = vdwg.mxu0
    %944 = vmatpush.bf16.msra.mxu0 %v703
    %945 = vmatpush.bf16.msra.mxu0 %v699
    %946 = vmatpush.bf16.msra.mxu0 %v695
    %947 = vmatpush.bf16.msra.mxu0 %v691
    %948 = vmatpush.bf16.msra.mxu0 %v687
    %949 = vmatpush.bf16.msra.mxu0 %v683
    %950 = vmatpush.bf16.msra.mxu0 %v679
    %951 = vmatpush.bf16.msra.mxu0 %v675
    %952 = vmatmul.bf16.gmra.mxu0 %v86
    %v953 = vpop.f32.mrf.mxu0
    %v954 = vadd.f32 %v941, %v953
    %v955 = vpop.f32.mrf.mxu0
    %956 = vdwg.mxu0
    %957 = vmatpush.bf16.msra.mxu0 %v735
    %958 = vmatpush.bf16.msra.mxu0 %v731
    %959 = vmatpush.bf16.msra.mxu0 %v727
    %960 = vmatpush.bf16.msra.mxu0 %v723
    %961 = vmatpush.bf16.msra.mxu0 %v719
    %962 = vmatpush.bf16.msra.mxu0 %v715
    %963 = vmatpush.bf16.msra.mxu0 %v711
    %964 = vmatpush.bf16.msra.mxu0 %v707
    %965 = vmatmul.bf16.gmra.mxu0 %v87
    %v966 = vpop.f32.mrf.mxu0
    %v967 = vadd.f32 %v954, %v966
    %v968 = vpop.f32.mrf.mxu0
    %969 = vdwg.mxu0
    %970 = vmatpush.bf16.msra.mxu0 %v640
    %971 = vmatpush.bf16.msra.mxu0 %v636
    %972 = vmatpush.bf16.msra.mxu0 %v632
    %973 = vmatpush.bf16.msra.mxu0 %v628
    %974 = vmatpush.bf16.msra.mxu0 %v624
    %975 = vmatpush.bf16.msra.mxu0 %v620
    %976 = vmatpush.bf16.msra.mxu0 %v616
    %977 = vmatpush.bf16.msra.mxu0 %v612
    %978 = vmatmul.bf16.gmra.mxu0 %v84
    %v979 = vpop.f32.mrf.mxu0
    %v980 = vadd.f32 %v220, %v979
    %v981 = vpop.f32.mrf.mxu0
    %982 = vdwg.mxu0
    %983 = vmatpush.bf16.msra.mxu0 %v672
    %984 = vmatpush.bf16.msra.mxu0 %v668
    %985 = vmatpush.bf16.msra.mxu0 %v664
    %986 = vmatpush.bf16.msra.mxu0 %v660
    %987 = vmatpush.bf16.msra.mxu0 %v656
    %988 = vmatpush.bf16.msra.mxu0 %v652
    %989 = vmatpush.bf16.msra.mxu0 %v648
    %990 = vmatpush.bf16.msra.mxu0 %v644
    %991 = vmatmul.bf16.gmra.mxu0 %v85
    %v992 = vpop.f32.mrf.mxu0
    %v993 = vadd.f32 %v980, %v992
    %v994 = vpop.f32.mrf.mxu0
    %995 = vdwg.mxu0
    %996 = vmatpush.bf16.msra.mxu0 %v704
    %997 = vmatpush.bf16.msra.mxu0 %v700
    %998 = vmatpush.bf16.msra.mxu0 %v696
    %999 = vmatpush.bf16.msra.mxu0 %v692
    %1000 = vmatpush.bf16.msra.mxu0 %v688
    %1001 = vmatpush.bf16.msra.mxu0 %v684
    %1002 = vmatpush.bf16.msra.mxu0 %v680
    %1003 = vmatpush.bf16.msra.mxu0 %v676
    %1004 = vmatmul.bf16.gmra.mxu0 %v86
    %v1005 = vpop.f32.mrf.mxu0
    %v1006 = vadd.f32 %v993, %v1005
    %v1007 = vpop.f32.mrf.mxu0
    %1008 = vdwg.mxu0
    %1009 = vmatpush.bf16.msra.mxu0 %v736
    %1010 = vmatpush.bf16.msra.mxu0 %v732
    %1011 = vmatpush.bf16.msra.mxu0 %v728
    %1012 = vmatpush.bf16.msra.mxu0 %v724
    %1013 = vmatpush.bf16.msra.mxu0 %v720
    %1014 = vmatpush.bf16.msra.mxu0 %v716
    %1015 = vmatpush.bf16.msra.mxu0 %v712
    %1016 = vmatpush.bf16.msra.mxu0 %v708
    %1017 = vmatmul.bf16.gmra.mxu0 %v87
    %v1018 = vpop.f32.mrf.mxu0
    %v1019 = vadd.f32 %v1006, %v1018
    %v1020 = vpop.f32.mrf.mxu0
    %1021 = vdwg.mxu0
    %1022 = vmatpush.bf16.msra.mxu0 %v641
    %1023 = vmatpush.bf16.msra.mxu0 %v637
    %1024 = vmatpush.bf16.msra.mxu0 %v633
    %1025 = vmatpush.bf16.msra.mxu0 %v629
    %1026 = vmatpush.bf16.msra.mxu0 %v625
    %1027 = vmatpush.bf16.msra.mxu0 %v621
    %1028 = vmatpush.bf16.msra.mxu0 %v617
    %1029 = vmatpush.bf16.msra.mxu0 %v613
    %1030 = vmatmul.bf16.gmra.mxu0 %v84
    %v1031 = vpop.f32.mrf.mxu0
    %v1032 = vadd.f32 %v221, %v1031
    %v1033 = vpop.f32.mrf.mxu0
    %1034 = vdwg.mxu0
    %1035 = vmatpush.bf16.msra.mxu0 %v673
    %1036 = vmatpush.bf16.msra.mxu0 %v669
    %1037 = vmatpush.bf16.msra.mxu0 %v665
    %1038 = vmatpush.bf16.msra.mxu0 %v661
    %1039 = vmatpush.bf16.msra.mxu0 %v657
    %1040 = vmatpush.bf16.msra.mxu0 %v653
    %1041 = vmatpush.bf16.msra.mxu0 %v649
    %1042 = vmatpush.bf16.msra.mxu0 %v645
    %1043 = vmatmul.bf16.gmra.mxu0 %v85
    %v1044 = vpop.f32.mrf.mxu0
    %v1045 = vadd.f32 %v1032, %v1044
    %v1046 = vpop.f32.mrf.mxu0
    %1047 = vdwg.mxu0
    %1048 = vmatpush.bf16.msra.mxu0 %v705
    %1049 = vmatpush.bf16.msra.mxu0 %v701
    %1050 = vmatpush.bf16.msra.mxu0 %v697
    %1051 = vmatpush.bf16.msra.mxu0 %v693
    %1052 = vmatpush.bf16.msra.mxu0 %v689
    %1053 = vmatpush.bf16.msra.mxu0 %v685
    %1054 = vmatpush.bf16.msra.mxu0 %v681
    %1055 = vmatpush.bf16.msra.mxu0 %v677
    %1056 = vmatmul.bf16.gmra.mxu0 %v86
    %v1057 = vpop.f32.mrf.mxu0
    %v1058 = vadd.f32 %v1045, %v1057
    %v1059 = vpop.f32.mrf.mxu0
    %1060 = vdwg.mxu0
    %1061 = vmatpush.bf16.msra.mxu0 %v737
    %1062 = vmatpush.bf16.msra.mxu0 %v733
    %1063 = vmatpush.bf16.msra.mxu0 %v729
    %1064 = vmatpush.bf16.msra.mxu0 %v725
    %1065 = vmatpush.bf16.msra.mxu0 %v721
    %1066 = vmatpush.bf16.msra.mxu0 %v717
    %1067 = vmatpush.bf16.msra.mxu0 %v713
    %1068 = vmatpush.bf16.msra.mxu0 %v709
    %1069 = vmatmul.bf16.gmra.mxu0 %v87
    %v1070 = vpop.f32.mrf.mxu0
    %v1071 = vadd.f32 %v1058, %v1070
    %v1072 = vpop.f32.mrf.mxu0
    %1073 = vdwg.mxu0
    %v1074 = vmax.f32 %v915, 0.0
    %v1075 = vmax.f32 %v967, 0.0
    %v1076 = vmax.f32 %v1019, 0.0
    %v1077 = vmax.f32 %v1071, 0.0
    %v1078 = vpack.c.bf16 %v1074, %v1074
    %v1079 = vpack.c.bf16 %v1075, %v1075
    %v1080 = vpack.c.bf16 %v1076, %v1076
    %v1081 = vpack.c.bf16 %v1077, %v1077
    %v1082 = vld [vmem:[#allocation8] sm:$0xff]
    %v1083 = vld [vmem:[#allocation8 + $0x8] sm:$0xff]
    %v1084 = vld [vmem:[#allocation8 + $0x10] sm:$0xff]
    %v1085 = vld [vmem:[#allocation8 + $0x18] sm:$0xff]
    %v1086 = vld [vmem:[#allocation8 + $0x20] sm:$0xff]
    %v1087 = vld [vmem:[#allocation8 + $0x28] sm:$0xff]
    %v1088 = vld [vmem:[#allocation8 + $0x30] sm:$0xff]
    %v1089 = vld [vmem:[#allocation8 + $0x38] sm:$0xff]
    %v1090 = vld [vmem:[#allocation8 + $0x40] sm:$0xff]
    %v1091 = vld [vmem:[#allocation8 + $0x48] sm:$0xff]
    %v1092 = vld [vmem:[#allocation8 + $0x50] sm:$0xff]
    %v1093 = vld [vmem:[#allocation8 + $0x58] sm:$0xff]
    %v1094 = vld [vmem:[#allocation8 + $0x60] sm:$0xff]
    %v1095 = vld [vmem:[#allocation8 + $0x68] sm:$0xff]
    %v1096 = vld [vmem:[#allocation8 + $0x70] sm:$0xff]
    %v1097 = vld [vmem:[#allocation8 + $0x78] sm:$0xff]
    %v1098 = vld [vmem:[#allocation8 + $0x80] sm:$0xff]
    %v1099 = vld [vmem:[#allocation8 + $0x88] sm:$0xff]
    %v1100 = vld [vmem:[#allocation8 + $0x90] sm:$0xff]
    %v1101 = vld [vmem:[#allocation8 + $0x98] sm:$0xff]
    %v1102 = vld [vmem:[#allocation8 + $0xa0] sm:$0xff]
    %v1103 = vld [vmem:[#allocation8 + $0xa8] sm:$0xff]
    %v1104 = vld [vmem:[#allocation8 + $0xb0] sm:$0xff]
    %v1105 = vld [vmem:[#allocation8 + $0xb8] sm:$0xff]
    %v1106 = vld [vmem:[#allocation8 + $0xc0] sm:$0xff]
    %v1107 = vld [vmem:[#allocation8 + $0xc8] sm:$0xff]
    %v1108 = vld [vmem:[#allocation8 + $0xd0] sm:$0xff]
    %v1109 = vld [vmem:[#allocation8 + $0xd8] sm:$0xff]
    %v1110 = vld [vmem:[#allocation8 + $0xe0] sm:$0xff]
    %v1111 = vld [vmem:[#allocation8 + $0xe8] sm:$0xff]
    %v1112 = vld [vmem:[#allocation8 + $0xf0] sm:$0xff]
    %v1113 = vld [vmem:[#allocation8 + $0xf8] sm:$0xff]
    %v1114 = vld [vmem:[#allocation8 + $0x100] sm:$0xff]
    %v1115 = vld [vmem:[#allocation8 + $0x108] sm:$0xff]
    %v1116 = vld [vmem:[#allocation8 + $0x110] sm:$0xff]
    %v1117 = vld [vmem:[#allocation8 + $0x118] sm:$0xff]
    %v1118 = vld [vmem:[#allocation8 + $0x120] sm:$0xff]
    %v1119 = vld [vmem:[#allocation8 + $0x128] sm:$0xff]
    %v1120 = vld [vmem:[#allocation8 + $0x130] sm:$0xff]
    %v1121 = vld [vmem:[#allocation8 + $0x138] sm:$0xff]
    %v1122 = vld [vmem:[#allocation8 + $0x140] sm:$0xff]
    %v1123 = vld [vmem:[#allocation8 + $0x148] sm:$0xff]
    %v1124 = vld [vmem:[#allocation8 + $0x150] sm:$0xff]
    %v1125 = vld [vmem:[#allocation8 + $0x158] sm:$0xff]
    %v1126 = vld [vmem:[#allocation8 + $0x160] sm:$0xff]
    %v1127 = vld [vmem:[#allocation8 + $0x168] sm:$0xff]
    %v1128 = vld [vmem:[#allocation8 + $0x170] sm:$0xff]
    %v1129 = vld [vmem:[#allocation8 + $0x178] sm:$0xff]
    %v1130 = vld [vmem:[#allocation8 + $0x180] sm:$0xff]
    %v1131 = vld [vmem:[#allocation8 + $0x188] sm:$0xff]
    %v1132 = vld [vmem:[#allocation8 + $0x190] sm:$0xff]
    %v1133 = vld [vmem:[#allocation8 + $0x198] sm:$0xff]
    %v1134 = vld [vmem:[#allocation8 + $0x1a0] sm:$0xff]
    %v1135 = vld [vmem:[#allocation8 + $0x1a8] sm:$0xff]
    %v1136 = vld [vmem:[#allocation8 + $0x1b0] sm:$0xff]
    %v1137 = vld [vmem:[#allocation8 + $0x1b8] sm:$0xff]
    %v1138 = vld [vmem:[#allocation8 + $0x1c0] sm:$0xff]
    %v1139 = vld [vmem:[#allocation8 + $0x1c8] sm:$0xff]
    %v1140 = vld [vmem:[#allocation8 + $0x1d0] sm:$0xff]
    %v1141 = vld [vmem:[#allocation8 + $0x1d8] sm:$0xff]
    %v1142 = vld [vmem:[#allocation8 + $0x1e0] sm:$0xff]
    %v1143 = vld [vmem:[#allocation8 + $0x1e8] sm:$0xff]
    %v1144 = vld [vmem:[#allocation8 + $0x1f0] sm:$0xff]
    %v1145 = vld [vmem:[#allocation8 + $0x1f8] sm:$0xff]
    %v1146 = vld [vmem:[%s4] sm:$0x3]
    %v1148 = vperm.slane %v1146, 0
    %v1149 = vperm.slane %v1146, 1
    %v1216 = vunpack.c.l.b16 %v1082
    %v1217 = vunpack.c.h.b16 %v1082
    %v1218 = vunpack.c.l.b16 %v1083
    %v1219 = vunpack.c.h.b16 %v1083
    %v1220 = vunpack.c.l.b16 %v1084
    %v1221 = vunpack.c.h.b16 %v1084
    %v1222 = vunpack.c.l.b16 %v1085
    %v1223 = vunpack.c.h.b16 %v1085
    %v1224 = vunpack.c.l.b16 %v1086
    %v1225 = vunpack.c.h.b16 %v1086
    %v1226 = vunpack.c.l.b16 %v1087
    %v1227 = vunpack.c.h.b16 %v1087
    %v1228 = vunpack.c.l.b16 %v1088
    %v1229 = vunpack.c.h.b16 %v1088
    %v1230 = vunpack.c.l.b16 %v1089
    %v1231 = vunpack.c.h.b16 %v1089
    %v1232 = vunpack.c.l.b16 %v1090
    %v1233 = vunpack.c.h.b16 %v1090
    %v1234 = vunpack.c.l.b16 %v1091
    %v1235 = vunpack.c.h.b16 %v1091
    %v1236 = vunpack.c.l.b16 %v1092
    %v1237 = vunpack.c.h.b16 %v1092
    %v1238 = vunpack.c.l.b16 %v1093
    %v1239 = vunpack.c.h.b16 %v1093
    %v1240 = vunpack.c.l.b16 %v1094
    %v1241 = vunpack.c.h.b16 %v1094
    %v1242 = vunpack.c.l.b16 %v1095
    %v1243 = vunpack.c.h.b16 %v1095
    %v1244 = vunpack.c.l.b16 %v1096
    %v1245 = vunpack.c.h.b16 %v1096
    %v1246 = vunpack.c.l.b16 %v1097
    %v1247 = vunpack.c.h.b16 %v1097
    %v1248 = vunpack.c.l.b16 %v1098
    %v1249 = vunpack.c.h.b16 %v1098
    %v1250 = vunpack.c.l.b16 %v1099
    %v1251 = vunpack.c.h.b16 %v1099
    %v1252 = vunpack.c.l.b16 %v1100
    %v1253 = vunpack.c.h.b16 %v1100
    %v1254 = vunpack.c.l.b16 %v1101
    %v1255 = vunpack.c.h.b16 %v1101
    %v1256 = vunpack.c.l.b16 %v1102
    %v1257 = vunpack.c.h.b16 %v1102
    %v1258 = vunpack.c.l.b16 %v1103
    %v1259 = vunpack.c.h.b16 %v1103
    %v1260 = vunpack.c.l.b16 %v1104
    %v1261 = vunpack.c.h.b16 %v1104
    %v1262 = vunpack.c.l.b16 %v1105
    %v1263 = vunpack.c.h.b16 %v1105
    %v1264 = vunpack.c.l.b16 %v1106
    %v1265 = vunpack.c.h.b16 %v1106
    %v1266 = vunpack.c.l.b16 %v1107
    %v1267 = vunpack.c.h.b16 %v1107
    %v1268 = vunpack.c.l.b16 %v1108
    %v1269 = vunpack.c.h.b16 %v1108
    %v1270 = vunpack.c.l.b16 %v1109
    %v1271 = vunpack.c.h.b16 %v1109
    %v1272 = vunpack.c.l.b16 %v1110
    %v1273 = vunpack.c.h.b16 %v1110
    %v1274 = vunpack.c.l.b16 %v1111
    %v1275 = vunpack.c.h.b16 %v1111
    %v1276 = vunpack.c.l.b16 %v1112
    %v1277 = vunpack.c.h.b16 %v1112
    %v1278 = vunpack.c.l.b16 %v1113
    %v1279 = vunpack.c.h.b16 %v1113
    %v1280 = vunpack.c.l.b16 %v1114
    %v1281 = vunpack.c.h.b16 %v1114
    %v1282 = vunpack.c.l.b16 %v1115
    %v1283 = vunpack.c.h.b16 %v1115
    %v1284 = vunpack.c.l.b16 %v1116
    %v1285 = vunpack.c.h.b16 %v1116
    %v1286 = vunpack.c.l.b16 %v1117
    %v1287 = vunpack.c.h.b16 %v1117
    %v1288 = vunpack.c.l.b16 %v1118
    %v1289 = vunpack.c.h.b16 %v1118
    %v1290 = vunpack.c.l.b16 %v1119
    %v1291 = vunpack.c.h.b16 %v1119
    %v1292 = vunpack.c.l.b16 %v1120
    %v1293 = vunpack.c.h.b16 %v1120
    %v1294 = vunpack.c.l.b16 %v1121
    %v1295 = vunpack.c.h.b16 %v1121
    %v1296 = vunpack.c.l.b16 %v1122
    %v1297 = vunpack.c.h.b16 %v1122
    %v1298 = vunpack.c.l.b16 %v1123
    %v1299 = vunpack.c.h.b16 %v1123
    %v1300 = vunpack.c.l.b16 %v1124
    %v1301 = vunpack.c.h.b16 %v1124
    %v1302 = vunpack.c.l.b16 %v1125
    %v1303 = vunpack.c.h.b16 %v1125
    %v1304 = vunpack.c.l.b16 %v1126
    %v1305 = vunpack.c.h.b16 %v1126
    %v1306 = vunpack.c.l.b16 %v1127
    %v1307 = vunpack.c.h.b16 %v1127
    %v1308 = vunpack.c.l.b16 %v1128
    %v1309 = vunpack.c.h.b16 %v1128
    %v1310 = vunpack.c.l.b16 %v1129
    %v1311 = vunpack.c.h.b16 %v1129
    %v1312 = vunpack.c.l.b16 %v1130
    %v1313 = vunpack.c.h.b16 %v1130
    %v1314 = vunpack.c.l.b16 %v1131
    %v1315 = vunpack.c.h.b16 %v1131
    %v1316 = vunpack.c.l.b16 %v1132
    %v1317 = vunpack.c.h.b16 %v1132
    %v1318 = vunpack.c.l.b16 %v1133
    %v1319 = vunpack.c.h.b16 %v1133
    %v1320 = vunpack.c.l.b16 %v1134
    %v1321 = vunpack.c.h.b16 %v1134
    %v1322 = vunpack.c.l.b16 %v1135
    %v1323 = vunpack.c.h.b16 %v1135
    %v1324 = vunpack.c.l.b16 %v1136
    %v1325 = vunpack.c.h.b16 %v1136
    %v1326 = vunpack.c.l.b16 %v1137
    %v1327 = vunpack.c.h.b16 %v1137
    %v1328 = vunpack.c.l.b16 %v1138
    %v1329 = vunpack.c.h.b16 %v1138
    %v1330 = vunpack.c.l.b16 %v1139
    %v1331 = vunpack.c.h.b16 %v1139
    %v1332 = vunpack.c.l.b16 %v1140
    %v1333 = vunpack.c.h.b16 %v1140
    %v1334 = vunpack.c.l.b16 %v1141
    %v1335 = vunpack.c.h.b16 %v1141
    %v1336 = vunpack.c.l.b16 %v1142
    %v1337 = vunpack.c.h.b16 %v1142
    %v1338 = vunpack.c.l.b16 %v1143
    %v1339 = vunpack.c.h.b16 %v1143
    %v1340 = vunpack.c.l.b16 %v1144
    %v1341 = vunpack.c.h.b16 %v1144
    %v1342 = vunpack.c.l.b16 %v1145
    %v1343 = vunpack.c.h.b16 %v1145
    %v1344 = vpack.c.b16 %v1218, %v1216
    %v1345 = vpack.c.b16 %v1219, %v1217
    %v1346 = vpack.c.b16 %v1222, %v1220
    %v1347 = vpack.c.b16 %v1223, %v1221
    %v1348 = vpack.c.b16 %v1226, %v1224
    %v1349 = vpack.c.b16 %v1227, %v1225
    %v1350 = vpack.c.b16 %v1230, %v1228
    %v1351 = vpack.c.b16 %v1231, %v1229
    %v1352 = vpack.c.b16 %v1234, %v1232
    %v1353 = vpack.c.b16 %v1235, %v1233
    %v1354 = vpack.c.b16 %v1238, %v1236
    %v1355 = vpack.c.b16 %v1239, %v1237
    %v1356 = vpack.c.b16 %v1242, %v1240
    %v1357 = vpack.c.b16 %v1243, %v1241
    %v1358 = vpack.c.b16 %v1246, %v1244
    %v1359 = vpack.c.b16 %v1247, %v1245
    %v1360 = vpack.c.b16 %v1250, %v1248
    %v1361 = vpack.c.b16 %v1251, %v1249
    %v1362 = vpack.c.b16 %v1254, %v1252
    %v1363 = vpack.c.b16 %v1255, %v1253
    %v1364 = vpack.c.b16 %v1258, %v1256
    %v1365 = vpack.c.b16 %v1259, %v1257
    %v1366 = vpack.c.b16 %v1262, %v1260
    %v1367 = vpack.c.b16 %v1263, %v1261
    %v1368 = vpack.c.b16 %v1266, %v1264
    %v1369 = vpack.c.b16 %v1267, %v1265
    %v1370 = vpack.c.b16 %v1270, %v1268
    %v1371 = vpack.c.b16 %v1271, %v1269
    %v1372 = vpack.c.b16 %v1274, %v1272
    %v1373 = vpack.c.b16 %v1275, %v1273
    %v1374 = vpack.c.b16 %v1278, %v1276
    %v1375 = vpack.c.b16 %v1279, %v1277
    %v1376 = vpack.c.b16 %v1282, %v1280
    %v1377 = vpack.c.b16 %v1283, %v1281
    %v1378 = vpack.c.b16 %v1286, %v1284
    %v1379 = vpack.c.b16 %v1287, %v1285
    %v1380 = vpack.c.b16 %v1290, %v1288
    %v1381 = vpack.c.b16 %v1291, %v1289
    %v1382 = vpack.c.b16 %v1294, %v1292
    %v1383 = vpack.c.b16 %v1295, %v1293
    %v1384 = vpack.c.b16 %v1298, %v1296
    %v1385 = vpack.c.b16 %v1299, %v1297
    %v1386 = vpack.c.b16 %v1302, %v1300
    %v1387 = vpack.c.b16 %v1303, %v1301
    %v1388 = vpack.c.b16 %v1306, %v1304
    %v1389 = vpack.c.b16 %v1307, %v1305
    %v1390 = vpack.c.b16 %v1310, %v1308
    %v1391 = vpack.c.b16 %v1311, %v1309
    %v1392 = vpack.c.b16 %v1314, %v1312
    %v1393 = vpack.c.b16 %v1315, %v1313
    %v1394 = vpack.c.b16 %v1318, %v1316
    %v1395 = vpack.c.b16 %v1319, %v1317
    %v1396 = vpack.c.b16 %v1322, %v1320
    %v1397 = vpack.c.b16 %v1323, %v1321
    %v1398 = vpack.c.b16 %v1326, %v1324
    %v1399 = vpack.c.b16 %v1327, %v1325
    %v1400 = vpack.c.b16 %v1330, %v1328
    %v1401 = vpack.c.b16 %v1331, %v1329
    %v1402 = vpack.c.b16 %v1334, %v1332
    %v1403 = vpack.c.b16 %v1335, %v1333
    %v1404 = vpack.c.b16 %v1338, %v1336
    %v1405 = vpack.c.b16 %v1339, %v1337
    %v1406 = vpack.c.b16 %v1342, %v1340
    %v1407 = vpack.c.b16 %v1343, %v1341
    %1472 = vmatpush.bf16.msra.mxu0 %v1358
    %1473 = vmatpush.bf16.msra.mxu0 %v1356
    %1474 = vmatpush.bf16.msra.mxu0 %v1354
    %1475 = vmatpush.bf16.msra.mxu0 %v1352
    %1476 = vmatpush.bf16.msra.mxu0 %v1350
    %1477 = vmatpush.bf16.msra.mxu0 %v1348
    %1478 = vmatpush.bf16.msra.mxu0 %v1346
    %1479 = vmatpush.bf16.msra.mxu0 %v1344
    %1480 = vmatmul.bf16.gmra.mxu0 %v1078
    %v1481 = vpop.f32.mrf.mxu0
    %v1482 = vadd.f32 %v1148, %v1481
    %v1483 = vpop.f32.mrf.mxu0
    %1484 = vdwg.mxu0
    %1485 = vmatpush.bf16.msra.mxu0 %v1374
    %1486 = vmatpush.bf16.msra.mxu0 %v1372
    %1487 = vmatpush.bf16.msra.mxu0 %v1370
    %1488 = vmatpush.bf16.msra.mxu0 %v1368
    %1489 = vmatpush.bf16.msra.mxu0 %v1366
    %1490 = vmatpush.bf16.msra.mxu0 %v1364
    %1491 = vmatpush.bf16.msra.mxu0 %v1362
    %1492 = vmatpush.bf16.msra.mxu0 %v1360
    %1493 = vmatmul.bf16.gmra.mxu0 %v1079
    %v1494 = vpop.f32.mrf.mxu0
    %v1495 = vadd.f32 %v1482, %v1494
    %v1496 = vpop.f32.mrf.mxu0
    %1497 = vdwg.mxu0
    %1498 = vmatpush.bf16.msra.mxu0 %v1390
    %1499 = vmatpush.bf16.msra.mxu0 %v1388
    %1500 = vmatpush.bf16.msra.mxu0 %v1386
    %1501 = vmatpush.bf16.msra.mxu0 %v1384
    %1502 = vmatpush.bf16.msra.mxu0 %v1382
    %1503 = vmatpush.bf16.msra.mxu0 %v1380
    %1504 = vmatpush.bf16.msra.mxu0 %v1378
    %1505 = vmatpush.bf16.msra.mxu0 %v1376
    %1506 = vmatmul.bf16.gmra.mxu0 %v1080
    %v1507 = vpop.f32.mrf.mxu0
    %v1508 = vadd.f32 %v1495, %v1507
    %v1509 = vpop.f32.mrf.mxu0
    %1510 = vdwg.mxu0
    %1511 = vmatpush.bf16.msra.mxu0 %v1406
    %1512 = vmatpush.bf16.msra.mxu0 %v1404
    %1513 = vmatpush.bf16.msra.mxu0 %v1402
    %1514 = vmatpush.bf16.msra.mxu0 %v1400
    %1515 = vmatpush.bf16.msra.mxu0 %v1398
    %1516 = vmatpush.bf16.msra.mxu0 %v1396
    %1517 = vmatpush.bf16.msra.mxu0 %v1394
    %1518 = vmatpush.bf16.msra.mxu0 %v1392
    %1519 = vmatmul.bf16.gmra.mxu0 %v1081
    %v1520 = vpop.f32.mrf.mxu0
    %v1521 = vadd.f32 %v1508, %v1520
    %v1522 = vpop.f32.mrf.mxu0
    %1523 = vdwg.mxu0
    %1524 = vmatpush.bf16.msra.mxu0 %v1359
    %1525 = vmatpush.bf16.msra.mxu0 %v1357
    %1526 = vmatpush.bf16.msra.mxu0 %v1355
    %1527 = vmatpush.bf16.msra.mxu0 %v1353
    %1528 = vmatpush.bf16.msra.mxu0 %v1351
    %1529 = vmatpush.bf16.msra.mxu0 %v1349
    %1530 = vmatpush.bf16.msra.mxu0 %v1347
    %1531 = vmatpush.bf16.msra.mxu0 %v1345
    %1532 = vmatmul.bf16.gmra.mxu0 %v1078
    %v1533 = vpop.f32.mrf.mxu0
    %v1534 = vadd.f32 %v1149, %v1533
    %v1535 = vpop.f32.mrf.mxu0
    %1536 = vdwg.mxu0
    %1537 = vmatpush.bf16.msra.mxu0 %v1375
    %1538 = vmatpush.bf16.msra.mxu0 %v1373
    %1539 = vmatpush.bf16.msra.mxu0 %v1371
    %1540 = vmatpush.bf16.msra.mxu0 %v1369
    %1541 = vmatpush.bf16.msra.mxu0 %v1367
    %1542 = vmatpush.bf16.msra.mxu0 %v1365
    %1543 = vmatpush.bf16.msra.mxu0 %v1363
    %1544 = vmatpush.bf16.msra.mxu0 %v1361
    %1545 = vmatmul.bf16.gmra.mxu0 %v1079
    %v1546 = vpop.f32.mrf.mxu0
    %v1547 = vadd.f32 %v1534, %v1546
    %v1548 = vpop.f32.mrf.mxu0
    %1549 = vdwg.mxu0
    %1550 = vmatpush.bf16.msra.mxu0 %v1391
    %1551 = vmatpush.bf16.msra.mxu0 %v1389
    %1552 = vmatpush.bf16.msra.mxu0 %v1387
    %1553 = vmatpush.bf16.msra.mxu0 %v1385
    %1554 = vmatpush.bf16.msra.mxu0 %v1383
    %1555 = vmatpush.bf16.msra.mxu0 %v1381
    %1556 = vmatpush.bf16.msra.mxu0 %v1379
    %1557 = vmatpush.bf16.msra.mxu0 %v1377
    %1558 = vmatmul.bf16.gmra.mxu0 %v1080
    %v1559 = vpop.f32.mrf.mxu0
    %v1560 = vadd.f32 %v1547, %v1559
    %v1561 = vpop.f32.mrf.mxu0
    %1562 = vdwg.mxu0
    %1563 = vmatpush.bf16.msra.mxu0 %v1407
    %1564 = vmatpush.bf16.msra.mxu0 %v1405
    %1565 = vmatpush.bf16.msra.mxu0 %v1403
    %1566 = vmatpush.bf16.msra.mxu0 %v1401
    %1567 = vmatpush.bf16.msra.mxu0 %v1399
    %1568 = vmatpush.bf16.msra.mxu0 %v1397
    %1569 = vmatpush.bf16.msra.mxu0 %v1395
    %1570 = vmatpush.bf16.msra.mxu0 %v1393
    %1571 = vmatmul.bf16.gmra.mxu0 %v1081
    %v1572 = vpop.f32.mrf.mxu0
    %v1573 = vadd.f32 %v1560, %v1572
    %v1574 = vpop.f32.mrf.mxu0
    %1575 = vdwg.mxu0
    %1576 = vst [vmem:[#allocation10] sm:$0xff] %v1521
    %1577 = vst [vmem:[#allocation10 + $0x8] sm:$0xff] %v1573
    // Predicated region
    $region38: #{projection_head.1} parent=1 // pred_check
      _
    $region39: #{projection_head.1} parent=1 // pred_check_branch
      %1579 = sbr.rel (0) target = $region41
    $region40: #{projection_head.1} parent=1 // pred_region
      %1581 = vsyncadd [#allocation4], 0
      %s1583 = sshll.u32 [#allocation10], 4
      %s1584 = int_to_ptr.vmem [resolvable:$true] %s1583
      %s1585 = sshll.u32 %s5, 4
      %s1586 = int_to_ptr.hbm [resolvable:$true] %s1585
      %1588 = dma.vmem_to_hbm [thread:$0]  %s1584, 256, %s1586, [#allocation4]
    $region41: #{projection_head.1} parent=1 // pred_fallthru
      _
    // Predicated region
    $region42: #{projection_head.1} parent=1 // pred_check
      _
    $region43: #{projection_head.1} parent=1 // pred_check_branch
      %1590 = sbr.rel (0) target = $region45
    $region44: #{projection_head.1} parent=1 // pred_region
      %1592 = dma.done [#allocation4], 256
    $region45: #{projection_head.1} parent=1 // pred_fallthru
      _
    %1593 = vsyncpa [#allocation3], 1
    %1594 = vsyncpa [#allocation6], 1
    %1595 = vsyncpa [#allocation9], 1
    %1596 = vsyncpa [#allocation4], 1

</llo_original>
